<compile_context>
chip_gen: v5e
topology: v5e:2x2
jax: 0.10.0
libtpu: 0.0.40
codegen_flags: <defaults>
</compile_context>

<pallas_src>
import functools

import jax
import jax.numpy as jnp
from jax import lax
from jax.experimental import pallas as pl
from jax.experimental.pallas import tpu as pltpu


# ----------------------------------------------------------------------------
# Static geometry shared by wrapper, parameter prep and kernels
# ----------------------------------------------------------------------------
def _geom(C, H, W):
    Ho1, Wo1 = (H - 8) // 4 + 1, (W - 8) // 4 + 1
    Ho2, Wo2 = (Ho1 - 4) // 2 + 1, (Wo1 - 4) // 2 + 1
    assert Ho2 >= 1 and Wo2 >= 1, "input too small for the two convs"
    Hq, Wq = Ho1 + 1, Wo1 + 1            # 4x4 space-to-depth grid of the input
    K1 = 16 * C                          # conv1 K per shift after space-to-depth
    M2 = Ho2 * Wo2                       # valid conv2 output positions
    M2p = 8 * pl.cdiv(M2, 8)             # padded (zero rows in P00 / fc weights)
    S = 2 * (Ho2 - 1) * Wq + 2 * (Wo2 - 1) + 1   # selection span over y1 rows
    M1 = 3 * Wq + 3 + S                  # conv1 output rows the kernel computes
    # All in-kernel slices are provably in bounds for any valid conv geometry:
    assert Wq + 1 + M1 <= Hq * Wq                     # conv1 operand slices fit
    assert Wo1 >= 2 * Wo2 + 2 and Ho1 >= 2 * Ho2 + 2  # never selects wrap garbage
    return dict(Ho1=Ho1, Wo1=Wo1, Hq=Hq, Wq=Wq, Ho2=Ho2, Wo2=Wo2, K1=K1,
                M1=M1, M2=M2, M2p=M2p, S=S, F=M2p * 32)


# ----------------------------------------------------------------------------
# Pallas kernels
# ----------------------------------------------------------------------------
def _conv12_kernel(x_ref, w1_ref, b1_ref, p_ref, w2_ref, b2_ref, o_ref,
                   *, n_img, wq, m1, sel):
    """Fused conv1(8x8,s4)+ReLU -> stride-2 repack -> conv2(4x4,s2)+ReLU.

    x_ref : (n_img, Hq*Wq, 16C) bf16  space-to-depth(4) input, flat spatial rows
    w1_ref: (4*16C, 16)         bf16  conv1 weights, K-concat over the 2x2 shifts
    p_ref : (M2p, sel)          bf16  0/1 row-selection matrix (stride-2 gather)
    w2_ref: (256, 32)           bf16  conv2 weights, K-concat over the 4x4 taps
    o_ref : (n_img, M2p, 32)    bf16
    """
    off1 = (0, 1, wq, wq + 1)
    for b in range(n_img):                      # static unroll: independent images
        # conv1: single K = 4*16C matmul, f32 accumulate, bias + ReLU in f32.
        a1 = jnp.concatenate([x_ref[b, t:t + m1, :] for t in off1], axis=-1)
        y1 = jnp.dot(a1, w1_ref[...], preferred_element_type=jnp.float32)
        y1 = jnp.maximum(y1 + b1_ref[...], 0.0).astype(jnp.bfloat16)      # (m1,16)

        # conv2 operand: 16 statically shifted slices of y1 concatenated along
        # lanes (K=256); the stride-2 output grid is then gathered with one
        # exact 0/1-selection matmul (no sublane/lane strided gathers).
        y1c = jnp.concatenate(
            [y1[a * wq + c: a * wq + c + sel, :]
             for a in range(4) for c in range(4)], axis=-1)               # (sel,256)
        y1q = jnp.dot(p_ref[...], y1c,
                      preferred_element_type=jnp.float32).astype(jnp.bfloat16)

        # conv2: single K=256 matmul + bias + ReLU.
        y2 = jnp.dot(y1q, w2_ref[...], preferred_element_type=jnp.float32)
        o_ref[b] = jnp.maximum(y2 + b2_ref[...], 0.0).astype(o_ref.dtype)


def _fc_kernel(x_ref, w_ref, b_ref, o_ref):
    acc = jnp.dot(x_ref[...], w_ref[...], preferred_element_type=jnp.float32)
    o_ref[...] = (acc + b_ref[...]).astype(o_ref.dtype)


# ----------------------------------------------------------------------------
# pallas_call wrappers
# ----------------------------------------------------------------------------
def _conv12_call(xq, w1cat, b1, p00, w2full, b2, *, n_img, wq, m1, sel, m2p):
    N, Rq, K1 = xq.shape
    kern = functools.partial(_conv12_kernel, n_img=n_img, wq=wq, m1=m1, sel=sel)
    return pl.pallas_call(
        kern,
        out_shape=jax.ShapeDtypeStruct((N, m2p, 32), jnp.bfloat16),
        grid=(N // n_img,),
        in_specs=[
            pl.BlockSpec((n_img, Rq, K1), lambda i: (i, 0, 0)),
            pl.BlockSpec(w1cat.shape, lambda i: (0, 0)),    # resident
            pl.BlockSpec(b1.shape, lambda i: (0, 0)),       # resident
            pl.BlockSpec(p00.shape, lambda i: (0, 0)),      # resident
            pl.BlockSpec(w2full.shape, lambda i: (0, 0)),   # resident
            pl.BlockSpec(b2.shape, lambda i: (0, 0)),       # resident
        ],
        out_specs=pl.BlockSpec((n_img, m2p, 32), lambda i: (i, 0, 0)),
        compiler_params=pltpu.CompilerParams(
            dimension_semantics=("parallel",)),
    )(xq, w1cat, b1, p00, w2full, b2)


def _fc_call(x, w, b):
    N, F = x.shape
    Np = w.shape[1]
    bt = N if N <= 128 else 128            # full MXU rows when the batch allows
    return pl.pallas_call(
        _fc_kernel,
        out_shape=jax.ShapeDtypeStruct((N, Np), jnp.float32),
        grid=(pl.cdiv(N, bt),),
        in_specs=[
            pl.BlockSpec((bt, F), lambda i: (i, 0)),
            pl.BlockSpec((F, Np), lambda i: (0, 0)),        # resident
            pl.BlockSpec((1, Np), lambda i: (0, 0)),        # resident
        ],
        out_specs=pl.BlockSpec((bt, Np), lambda i: (i, 0)),
        compiler_params=pltpu.CompilerParams(
            dimension_semantics=("parallel",)),
    )(x, w, b)


# ----------------------------------------------------------------------------
# Parameter init (PyTorch layout) + conversion to kernel layout
# ----------------------------------------------------------------------------
def kaiming_normal(key, shape, fan_in):
    # nn.init.kaiming_normal_ default: gain=sqrt(2), mode='fan_in'
    return jax.random.normal(key, shape, jnp.float32) * jnp.sqrt(2.0 / fan_in)


def init_torch_params(key, in_shape, out_size):
    C, H, W = in_shape
    g = _geom(C, H, W)
    F_t = 32 * g["Ho2"] * g["Wo2"]
    k1, k2, k3, k4 = jax.random.split(key, 4)
    # NOTE: layer_init uses bias=0; small random biases are used here only to
    # exercise the bias path of the kernels (forward semantics are identical).
    return dict(
        w1=kaiming_normal(k1, (16, C, 8, 8), C * 8 * 8),
        b1=0.1 * jax.random.normal(jax.random.fold_in(k4, 0), (16,), jnp.float32),
        w2=kaiming_normal(k2, (32, 16, 4, 4), 16 * 4 * 4),
        b2=0.1 * jax.random.normal(jax.random.fold_in(k4, 1), (32,), jnp.float32),
        wf=kaiming_normal(k3, (out_size, F_t), F_t),
        bf=0.1 * jax.random.normal(jax.random.fold_in(k4, 2), (out_size,), jnp.float32),
    )


def prepare_encoder_params(tp, in_shape, out_size):
    """Fold 1/255 into w1, re-lay weights for the fused kernel, build the 0/1
    selection matrix, fold the NCHW-flatten permutation into the fc weights,
    pad fc output lanes to a 128 multiple, cast matmul weights to bf16."""
    C, H, W = in_shape
    g = _geom(C, H, W)
    Wq, Ho2, Wo2, M2, M2p, S = g["Wq"], g["Ho2"], g["Wo2"], g["M2"], g["M2p"], g["S"]

    # conv1: w1 (16,C,8,8); kernel row = 4*si+di, col = 4*sj+dj.
    # -> (si,sj,di,dj,ci,co) -> rows (si*2+sj)*16C + di*4C + dj*C + ci (K-concat).
    w1 = tp["w1"].astype(jnp.float32) / 255.0
    w1 = w1.reshape(16, C, 2, 4, 2, 4).transpose(2, 4, 3, 5, 1, 0)
    w1cat = w1.reshape(4 * 16 * C, 16).astype(jnp.bfloat16)

    # conv2: w2 (32,16,4,4) -> rows a*64 + b*16 + ci (matches the in-kernel concat).
    w2full = tp["w2"].transpose(2, 3, 1, 0).reshape(256, 32).astype(jnp.bfloat16)

    # 0/1 selection matrix gathering the stride-2 output grid from flat y1 rows.
    m = jnp.arange(M2)
    n0 = 2 * (m // Wo2) * Wq + 2 * (m % Wo2)
    p00 = jnp.zeros((M2p, S), jnp.float32).at[m, n0].set(1.0).astype(jnp.bfloat16)

    # fc: torch flatten index c*Ho2*Wo2 + m  ->  kernel index m*32 + c; zero rows
    # for the M2p padding, output lanes padded to a 128 multiple (lane-dense).
    wf = tp["wf"].reshape(out_size, 32, Ho2 * Wo2).transpose(2, 1, 0)   # (M2,32,out)
    wf = jnp.pad(wf, ((0, M2p - M2), (0, 0), (0, 0))).reshape(M2p * 32, out_size)
    n_pad = 128 * pl.cdiv(out_size, 128)
    wf = jnp.pad(wf, ((0, 0), (0, n_pad - out_size))).astype(jnp.bfloat16)
    bf = jnp.pad(tp["bf"], (0, n_pad - out_size)).reshape(1, n_pad).astype(jnp.float32)

    return dict(
        w1cat=w1cat, b1=tp["b1"].reshape(1, 16).astype(jnp.float32),
        p00=p00,
        w2full=w2full, b2=tp["b2"].reshape(1, 32).astype(jnp.float32),
        wf=wf, bf=bf,
    )


# ----------------------------------------------------------------------------
# Forward pass
# ----------------------------------------------------------------------------
@functools.partial(jax.jit, static_argnames=("out_size",))
def encoder_forward(params, x_nchw, *, out_size):
    N, C, H, W = x_nchw.shape
    g = _geom(C, H, W)
    Hq, Wq, K1 = g["Hq"], g["Wq"], g["K1"]

    # The only XLA glue pass: crop + 4x4 space-to-depth (channels-last) + bf16.
    # Zero expansion (same element count as the input) and no padding.
    xb = x_nchw[:, :, :4 * Hq, :4 * Wq].astype(jnp.bfloat16)
    xq = xb.reshape(N, C, Hq, 4, Wq, 4).transpose(0, 2, 4, 3, 5, 1)
    xq = xq.reshape(N, Hq * Wq, K1)

    # Images per grid step: amortize step overhead, but keep >=2 grid steps so
    # the "parallel" batch axis can shard across v7x's two TensorCores.
    B = 1
    for cand in (8, 4, 2):
        if N % cand == 0 and N // cand >= 2:
            B = cand
            break

    y2 = _conv12_call(xq, params["w1cat"], params["b1"], params["p00"],
                      params["w2full"], params["b2"],
                      n_img=B, wq=Wq, m1=g["M1"], sel=g["S"], m2p=g["M2p"])

    feats = y2.reshape(N, g["F"])          # free row-major collapse, no copy
    out = _fc_call(feats, params["wf"], params["bf"])
    return out[:, :out_size]


# ----------------------------------------------------------------------------
# Pure-JAX f32 reference (mirrors the PyTorch module exactly)
# ----------------------------------------------------------------------------
def reference_forward(tp, x):
    def conv(h, w, b, s):
        dn = lax.conv_dimension_numbers(h.shape, w.shape, ("NCHW", "OIHW", "NCHW"))
        h = lax.conv_general_dilated(h, w, (s, s), "VALID", dimension_numbers=dn)
        return h + b[None, :, None, None]

    h = jnp.maximum(conv(x / 255.0, tp["w1"], tp["b1"], 4), 0.0)
    h = jnp.maximum(conv(h, tp["w2"], tp["b2"], 2), 0.0)
    h = h.reshape(h.shape[0], -1)               # NCHW flatten, like nn.Flatten
    return h @ tp["wf"].T + tp["bf"][None, :]


if __name__ == "__main__":
    key = jax.random.PRNGKey(0)
    kx, kp = jax.random.split(key)

    in_shape = (4, 32, 32)   # (C, H, W): smallest spatial keeping conv2 valid
    out_size = 32
    batch = 2

    x = jax.random.uniform(kx, (batch,) + in_shape, jnp.float32, 0.0, 255.0)
    tparams = init_torch_params(kp, in_shape, out_size)
    params = prepare_encoder_params(tparams, in_shape, out_size)

    y = encoder_forward(params, x, out_size=out_size)
    jax.block_until_ready(y)
    assert y.shape == (batch, out_size), y.shape

    y_ref = reference_forward(tparams, x)
    scale = float(jnp.max(jnp.abs(y_ref)))
    err = float(jnp.max(jnp.abs(y - y_ref)))
    # bf16 weights + bf16 activations in HBM: expect ~1e-2 relative error.
    assert err <= 8e-2 * max(1.0, scale), f"max abs err {err} (ref scale {scale})"

    print("KERNEL_OK")
</pallas_src>

<mosaic_0001>
module attributes {stable_mosaic.version = 11 : i64} {
  func.func @_conv12_kernel(%arg0: i32, %arg1: memref<1x64x64xbf16, #tpu.memory_space<vmem>>, %arg2: memref<256x16xbf16, #tpu.memory_space<vmem>>, %arg3: memref<1x16xf32, #tpu.memory_space<vmem>>, %arg4: memref<8x19xbf16, #tpu.memory_space<vmem>>, %arg5: memref<256x32xbf16, #tpu.memory_space<vmem>>, %arg6: memref<1x32xf32, #tpu.memory_space<vmem>>, %arg7: memref<1x8x32xbf16, #tpu.memory_space<vmem>>) attributes {dimension_semantics = [#tpu.dimension_semantics<parallel>], iteration_bounds = array<i64: 2>, scalar_prefetch = 0 : i64, scratch_operands = 0 : i64, tpu.core_type = #tpu.core_type<tc>, window_params = [{transform_indices = @transform_0, window_bounds = array<i64: 1, 64, 64>}, {pipeline_mode = #tpu.pipeline_mode<synchronous>, transform_indices = @transform_1, window_bounds = array<i64: 256, 16>}, {pipeline_mode = #tpu.pipeline_mode<synchronous>, transform_indices = @transform_2, window_bounds = array<i64: 1, 16>}, {pipeline_mode = #tpu.pipeline_mode<synchronous>, transform_indices = @transform_3, window_bounds = array<i64: 8, 19>}, {pipeline_mode = #tpu.pipeline_mode<synchronous>, transform_indices = @transform_4, window_bounds = array<i64: 256, 32>}, {pipeline_mode = #tpu.pipeline_mode<synchronous>, transform_indices = @transform_5, window_bounds = array<i64: 1, 32>}, {transform_indices = @transform_6, window_bounds = array<i64: 1, 8, 32>}]} {
    %c0 = arith.constant 0 : index
    %c0_0 = arith.constant 0 : index
    %c0_1 = arith.constant 0 : index
    %0 = vector.load %arg1[%c0, %c0_0, %c0_1] : memref<1x64x64xbf16, #tpu.memory_space<vmem>>, vector<1x46x64xbf16>
    %1 = vector.shape_cast %0 : vector<1x46x64xbf16> to vector<46x64xbf16>
    %c0_2 = arith.constant 0 : index
    %c1 = arith.constant 1 : index
    %c0_3 = arith.constant 0 : index
    %2 = vector.load %arg1[%c0_2, %c1, %c0_3] : memref<1x64x64xbf16, #tpu.memory_space<vmem>>, vector<1x46x64xbf16>
    %3 = vector.shape_cast %2 : vector<1x46x64xbf16> to vector<46x64xbf16>
    %c0_4 = arith.constant 0 : index
    %c8 = arith.constant 8 : index
    %c0_5 = arith.constant 0 : index
    %4 = vector.load %arg1[%c0_4, %c8, %c0_5] : memref<1x64x64xbf16, #tpu.memory_space<vmem>>, vector<1x46x64xbf16>
    %5 = vector.shape_cast %4 : vector<1x46x64xbf16> to vector<46x64xbf16>
    %c0_6 = arith.constant 0 : index
    %c9 = arith.constant 9 : index
    %c0_7 = arith.constant 0 : index
    %6 = vector.load %arg1[%c0_6, %c9, %c0_7] : memref<1x64x64xbf16, #tpu.memory_space<vmem>>, vector<1x46x64xbf16>
    %7 = vector.shape_cast %6 : vector<1x46x64xbf16> to vector<46x64xbf16>
    %8 = tpu.concatenate %1, %3, %5, %7 in 1 : vector<46x64xbf16>, vector<46x64xbf16>, vector<46x64xbf16>, vector<46x64xbf16> -> vector<46x256xbf16>
    %c0_8 = arith.constant 0 : index
    %c0_9 = arith.constant 0 : index
    %9 = vector.load %arg2[%c0_8, %c0_9] : memref<256x16xbf16, #tpu.memory_space<vmem>>, vector<256x16xbf16>
    %cst = arith.constant dense<0.000000e+00> : vector<46x16xf32>
    %10 = tpu.matmul %8, %9, %cst {dimension_numbers = #tpu.dot_dimension_numbers<[1], [0], [0], [1], [0, 0, 1, 1], [], []>} : vector<46x256xbf16>, vector<256x16xbf16>, vector<46x16xf32> -> vector<46x16xf32>
    %c0_10 = arith.constant 0 : index
    %c0_11 = arith.constant 0 : index
    %11 = vector.load %arg3[%c0_10, %c0_11] : memref<1x16xf32, #tpu.memory_space<vmem>>, vector<1x16xf32>
    %12 = vector.broadcast %11 : vector<1x16xf32> to vector<46x16xf32>
    %13 = arith.addf %10, %12 : vector<46x16xf32>
    %cst_12 = arith.constant 0.000000e+00 : f32
    %14 = vector.broadcast %cst_12 : f32 to vector<46x16xf32>
    %15 = arith.maximumf %13, %14 : vector<46x16xf32>
    %16 = arith.truncf %15 : vector<46x16xf32> to vector<46x16xbf16>
    %17 = vector.extract_strided_slice %16 {offsets = [0, 0], sizes = [19, 16], strides = [1, 1]} : vector<46x16xbf16> to vector<19x16xbf16>
    %18 = vector.extract_strided_slice %16 {offsets = [1, 0], sizes = [19, 16], strides = [1, 1]} : vector<46x16xbf16> to vector<19x16xbf16>
    %19 = vector.extract_strided_slice %16 {offsets = [2, 0], sizes = [19, 16], strides = [1, 1]} : vector<46x16xbf16> to vector<19x16xbf16>
    %20 = vector.extract_strided_slice %16 {offsets = [3, 0], sizes = [19, 16], strides = [1, 1]} : vector<46x16xbf16> to vector<19x16xbf16>
    %21 = vector.extract_strided_slice %16 {offsets = [8, 0], sizes = [19, 16], strides = [1, 1]} : vector<46x16xbf16> to vector<19x16xbf16>
    %22 = vector.extract_strided_slice %16 {offsets = [9, 0], sizes = [19, 16], strides = [1, 1]} : vector<46x16xbf16> to vector<19x16xbf16>
    %23 = vector.extract_strided_slice %16 {offsets = [10, 0], sizes = [19, 16], strides = [1, 1]} : vector<46x16xbf16> to vector<19x16xbf16>
    %24 = vector.extract_strided_slice %16 {offsets = [11, 0], sizes = [19, 16], strides = [1, 1]} : vector<46x16xbf16> to vector<19x16xbf16>
    %25 = vector.extract_strided_slice %16 {offsets = [16, 0], sizes = [19, 16], strides = [1, 1]} : vector<46x16xbf16> to vector<19x16xbf16>
    %26 = vector.extract_strided_slice %16 {offsets = [17, 0], sizes = [19, 16], strides = [1, 1]} : vector<46x16xbf16> to vector<19x16xbf16>
    %27 = vector.extract_strided_slice %16 {offsets = [18, 0], sizes = [19, 16], strides = [1, 1]} : vector<46x16xbf16> to vector<19x16xbf16>
    %28 = vector.extract_strided_slice %16 {offsets = [19, 0], sizes = [19, 16], strides = [1, 1]} : vector<46x16xbf16> to vector<19x16xbf16>
    %29 = vector.extract_strided_slice %16 {offsets = [24, 0], sizes = [19, 16], strides = [1, 1]} : vector<46x16xbf16> to vector<19x16xbf16>
    %30 = vector.extract_strided_slice %16 {offsets = [25, 0], sizes = [19, 16], strides = [1, 1]} : vector<46x16xbf16> to vector<19x16xbf16>
    %31 = vector.extract_strided_slice %16 {offsets = [26, 0], sizes = [19, 16], strides = [1, 1]} : vector<46x16xbf16> to vector<19x16xbf16>
    %32 = vector.extract_strided_slice %16 {offsets = [27, 0], sizes = [19, 16], strides = [1, 1]} : vector<46x16xbf16> to vector<19x16xbf16>
    %33 = tpu.concatenate %17, %18, %19, %20, %21, %22, %23, %24, %25, %26, %27, %28, %29, %30, %31, %32 in 1 : vector<19x16xbf16>, vector<19x16xbf16>, vector<19x16xbf16>, vector<19x16xbf16>, vector<19x16xbf16>, vector<19x16xbf16>, vector<19x16xbf16>, vector<19x16xbf16>, vector<19x16xbf16>, vector<19x16xbf16>, vector<19x16xbf16>, vector<19x16xbf16>, vector<19x16xbf16>, vector<19x16xbf16>, vector<19x16xbf16>, vector<19x16xbf16> -> vector<19x256xbf16>
    %c0_13 = arith.constant 0 : index
    %c0_14 = arith.constant 0 : index
    %34 = vector.load %arg4[%c0_13, %c0_14] : memref<8x19xbf16, #tpu.memory_space<vmem>>, vector<8x19xbf16>
    %cst_15 = arith.constant dense<0.000000e+00> : vector<8x256xf32>
    %35 = tpu.matmul %34, %33, %cst_15 {dimension_numbers = #tpu.dot_dimension_numbers<[1], [0], [0], [1], [0, 0, 1, 1], [], []>} : vector<8x19xbf16>, vector<19x256xbf16>, vector<8x256xf32> -> vector<8x256xf32>
    %36 = arith.truncf %35 : vector<8x256xf32> to vector<8x256xbf16>
    %c0_16 = arith.constant 0 : index
    %c0_17 = arith.constant 0 : index
    %37 = vector.load %arg5[%c0_16, %c0_17] : memref<256x32xbf16, #tpu.memory_space<vmem>>, vector<256x32xbf16>
    %cst_18 = arith.constant dense<0.000000e+00> : vector<8x32xf32>
    %38 = tpu.matmul %36, %37, %cst_18 {dimension_numbers = #tpu.dot_dimension_numbers<[1], [0], [0], [1], [0, 0, 1, 1], [], []>} : vector<8x256xbf16>, vector<256x32xbf16>, vector<8x32xf32> -> vector<8x32xf32>
    %c0_19 = arith.constant 0 : index
    %c0_20 = arith.constant 0 : index
    %39 = vector.load %arg6[%c0_19, %c0_20] : memref<1x32xf32, #tpu.memory_space<vmem>>, vector<1x32xf32>
    %40 = vector.broadcast %39 : vector<1x32xf32> to vector<8x32xf32>
    %41 = arith.addf %38, %40 : vector<8x32xf32>
    %cst_21 = arith.constant 0.000000e+00 : f32
    %42 = vector.broadcast %cst_21 : f32 to vector<8x32xf32>
    %43 = arith.maximumf %41, %42 : vector<8x32xf32>
    %44 = arith.truncf %43 : vector<8x32xf32> to vector<8x32xbf16>
    %c0_22 = arith.constant 0 : index
    %c0_23 = arith.constant 0 : index
    %c0_24 = arith.constant 0 : index
    %45 = vector.load %arg7[%c0_22, %c0_23, %c0_24] : memref<1x8x32xbf16, #tpu.memory_space<vmem>>, vector<1x8x32xbf16>
    %46 = vector.shape_cast %45 : vector<1x8x32xbf16> to vector<8x32xbf16>
    %47 = vector.shape_cast %44 : vector<8x32xbf16> to vector<1x8x32xbf16>
    tpu.vector_store %arg7[%c0_22, %c0_23, %c0_24], %47 {strides = array<i32>} : memref<1x8x32xbf16, #tpu.memory_space<vmem>>, vector<1x8x32xbf16>,
    return
  }
  func.func @transform_0(%arg0: i32) -> (i32, i32, i32) {
    %c0_i32 = arith.constant 0 : i32
    %c0_i32_0 = arith.constant 0 : i32
    %c0_i32_1 = arith.constant 0 : i32
    return %arg0, %c0_i32, %c0_i32_0 : i32, i32, i32
  }
  func.func @transform_1(%arg0: i32) -> (i32, i32) {
    %c0_i32 = arith.constant 0 : i32
    %c0_i32_0 = arith.constant 0 : i32
    %c0_i32_1 = arith.constant 0 : i32
    return %c0_i32, %c0_i32_0 : i32, i32
  }
  func.func @transform_2(%arg0: i32) -> (i32, i32) {
    %c0_i32 = arith.constant 0 : i32
    %c0_i32_0 = arith.constant 0 : i32
    %c0_i32_1 = arith.constant 0 : i32
    return %c0_i32, %c0_i32_0 : i32, i32
  }
  func.func @transform_3(%arg0: i32) -> (i32, i32) {
    %c0_i32 = arith.constant 0 : i32
    %c0_i32_0 = arith.constant 0 : i32
    %c0_i32_1 = arith.constant 0 : i32
    return %c0_i32, %c0_i32_0 : i32, i32
  }
  func.func @transform_4(%arg0: i32) -> (i32, i32) {
    %c0_i32 = arith.constant 0 : i32
    %c0_i32_0 = arith.constant 0 : i32
    %c0_i32_1 = arith.constant 0 : i32
    return %c0_i32, %c0_i32_0 : i32, i32
  }
  func.func @transform_5(%arg0: i32) -> (i32, i32) {
    %c0_i32 = arith.constant 0 : i32
    %c0_i32_0 = arith.constant 0 : i32
    %c0_i32_1 = arith.constant 0 : i32
    return %c0_i32, %c0_i32_0 : i32, i32
  }
  func.func @transform_6(%arg0: i32) -> (i32, i32, i32) {
    %c0_i32 = arith.constant 0 : i32
    %c0_i32_0 = arith.constant 0 : i32
    %c0_i32_1 = arith.constant 0 : i32
    return %arg0, %c0_i32, %c0_i32_0 : i32, i32, i32
  }
}

module attributes {stable_mosaic.version = 11 : i64} {
  func.func @_fc_kernel(%arg0: i32, %arg1: memref<2x256xbf16, #tpu.memory_space<vmem>>, %arg2: memref<256x128xbf16, #tpu.memory_space<vmem>>, %arg3: memref<1x128xf32, #tpu.memory_space<vmem>>, %arg4: memref<2x128xf32, #tpu.memory_space<vmem>>) attributes {dimension_semantics = [#tpu.dimension_semantics<parallel>], iteration_bounds = array<i64: 1>, scalar_prefetch = 0 : i64, scratch_operands = 0 : i64, tpu.core_type = #tpu.core_type<tc>, window_params = [{transform_indices = @transform_0, window_bounds = array<i64: 2, 256>}, {pipeline_mode = #tpu.pipeline_mode<synchronous>, transform_indices = @transform_1, window_bounds = array<i64: 256, 128>}, {pipeline_mode = #tpu.pipeline_mode<synchronous>, transform_indices = @transform_2, window_bounds = array<i64: 1, 128>}, {transform_indices = @transform_3, window_bounds = array<i64: 2, 128>}]} {
    %c0 = arith.constant 0 : index
    %c0_0 = arith.constant 0 : index
    %0 = vector.load %arg1[%c0, %c0_0] : memref<2x256xbf16, #tpu.memory_space<vmem>>, vector<2x256xbf16>
    %c0_1 = arith.constant 0 : index
    %c0_2 = arith.constant 0 : index
    %1 = vector.load %arg2[%c0_1, %c0_2] : memref<256x128xbf16, #tpu.memory_space<vmem>>, vector<256x128xbf16>
    %cst = arith.constant dense<0.000000e+00> : vector<2x128xf32>
    %2 = tpu.matmul %0, %1, %cst {dimension_numbers = #tpu.dot_dimension_numbers<[1], [0], [0], [1], [0, 0, 1, 1], [], []>} : vector<2x256xbf16>, vector<256x128xbf16>, vector<2x128xf32> -> vector<2x128xf32>
    %c0_3 = arith.constant 0 : index
    %c0_4 = arith.constant 0 : index
    %3 = vector.load %arg3[%c0_3, %c0_4] : memref<1x128xf32, #tpu.memory_space<vmem>>, vector<1x128xf32>
    %4 = vector.broadcast %3 : vector<1x128xf32> to vector<2x128xf32>
    %5 = arith.addf %2, %4 : vector<2x128xf32>
    %c0_5 = arith.constant 0 : index
    %c0_6 = arith.constant 0 : index
    %6 = vector.load %arg4[%c0_5, %c0_6] : memref<2x128xf32, #tpu.memory_space<vmem>>, vector<2x128xf32>
    tpu.vector_store %arg4[%c0_5, %c0_6], %5 {strides = array<i32>} : memref<2x128xf32, #tpu.memory_space<vmem>>, vector<2x128xf32>,
    return
  }
  func.func @transform_0(%arg0: i32) -> (i32, i32) {
    %c0_i32 = arith.constant 0 : i32
    %c0_i32_0 = arith.constant 0 : i32
    return %arg0, %c0_i32 : i32, i32
  }
  func.func @transform_1(%arg0: i32) -> (i32, i32) {
    %c0_i32 = arith.constant 0 : i32
    %c0_i32_0 = arith.constant 0 : i32
    %c0_i32_1 = arith.constant 0 : i32
    return %c0_i32, %c0_i32_0 : i32, i32
  }
  func.func @transform_2(%arg0: i32) -> (i32, i32) {
    %c0_i32 = arith.constant 0 : i32
    %c0_i32_0 = arith.constant 0 : i32
    %c0_i32_1 = arith.constant 0 : i32
    return %c0_i32, %c0_i32_0 : i32, i32
  }
  func.func @transform_3(%arg0: i32) -> (i32, i32) {
    %c0_i32 = arith.constant 0 : i32
    %c0_i32_0 = arith.constant 0 : i32
    return %arg0, %c0_i32 : i32, i32
  }
}

</mosaic_0001>

<llo_original>
// kernel: encoder_forward.3
$region0: #{encoder_forward.3}
  #allocation0 [shape = 'u32[]', space=smem, size = 0x4, offset = 0x4, fixed_abs, tag = 'smem constant byte address 0x4 - core index']
  #allocation1 [shape = 'u32[72,128]{1,0:T(1,128)}', space=vmem, size = 0x9000, scoped, tag = 'internal scratch']
  %s0 = inlined_call_operand.vmem [shape: bf16[2,256], index: 0, kind: input, shape index: {}]
  %s1 = inlined_call_operand.vmem [shape: bf16[256,128], index: 1, kind: input, shape index: {}]
  %s2 = inlined_call_operand.vmem [shape: f32[1,128], index: 2, kind: input, shape index: {}]
  %s3 = inlined_call_operand.hbm [shape: f32[2,128], index: 3, kind: output, shape index: {}]
  %s4 = sld [smem:[#allocation0]]
  $region22: #{encoder_forward.3} parent=0
    _
  %s6 = ssub.s32 1, %s4
  %s7 = scalar_select 0, %s6, %s4
  $region1: #{encoder_forward.3} parent=0
    #allocation2 [shape = 'u8[1024]{0}', space=vmem, size = 0x400, scoped, tag = 'output window, operand 0, single buffered']
    #allocation3 [shape = 's32[1]{0}', space=sflag, size = 0x4, scoped, tag = 'scoped memory for encoder_forward.3']
    %8 = vsyncpa [#allocation3], 0
    // Predicated region
    $region2: #{encoder_forward.3} parent=1 // pred_check
      _
    $region3: #{encoder_forward.3} parent=1 // pred_check_branch
      %10 = sbr.rel (0) target = $region5
    $region4: #{encoder_forward.3} parent=1 // pred_region
      _
    $region5: #{encoder_forward.3} parent=1 // pred_fallthru
      _
    // Predicated region
    $region6: #{encoder_forward.3} parent=1 // pred_check
      _
    $region7: #{encoder_forward.3} parent=1 // pred_check_branch
      %12 = sbr.rel (0) target = $region9
    $region8: #{encoder_forward.3} parent=1 // pred_region
      _
    $region9: #{encoder_forward.3} parent=1 // pred_fallthru
      _
    // Predicated region
    $region10: #{encoder_forward.3} parent=1 // pred_check
      _
    $region11: #{encoder_forward.3} parent=1 // pred_check_branch
      %14 = sbr.rel (0) target = $region13
    $region12: #{encoder_forward.3} parent=1 // pred_region
      _
    $region13: #{encoder_forward.3} parent=1 // pred_fallthru
      _
    %v15 = vld [vmem:[%s0] sm:$0x3]
    %v16 = vld [vmem:[%s1] sm:$0xf]
    %v17 = vld [vmem:[%s1 + $0x4] sm:$0xf]
    %v18 = vld [vmem:[%s1 + $0x8] sm:$0xf]
    %v19 = vld [vmem:[%s1 + $0xc] sm:$0xf]
    %v20 = vld [vmem:[%s1 + $0x10] sm:$0xf]
    %v21 = vld [vmem:[%s1 + $0x14] sm:$0xf]
    %v22 = vld [vmem:[%s1 + $0x18] sm:$0xf]
    %v23 = vld [vmem:[%s1 + $0x1c] sm:$0xf]
    %v24 = vld [vmem:[%s1 + $0x20] sm:$0xf]
    %v25 = vld [vmem:[%s1 + $0x24] sm:$0xf]
    %v26 = vld [vmem:[%s1 + $0x28] sm:$0xf]
    %v27 = vld [vmem:[%s1 + $0x2c] sm:$0xf]
    %v28 = vld [vmem:[%s1 + $0x30] sm:$0xf]
    %v29 = vld [vmem:[%s1 + $0x34] sm:$0xf]
    %v30 = vld [vmem:[%s1 + $0x38] sm:$0xf]
    %v31 = vld [vmem:[%s1 + $0x3c] sm:$0xf]
    %v32 = vld [vmem:[%s1 + $0x40] sm:$0xf]
    %v33 = vld [vmem:[%s1 + $0x44] sm:$0xf]
    %v34 = vld [vmem:[%s1 + $0x48] sm:$0xf]
    %v35 = vld [vmem:[%s1 + $0x4c] sm:$0xf]
    %v36 = vld [vmem:[%s1 + $0x50] sm:$0xf]
    %v37 = vld [vmem:[%s1 + $0x54] sm:$0xf]
    %v38 = vld [vmem:[%s1 + $0x58] sm:$0xf]
    %v39 = vld [vmem:[%s1 + $0x5c] sm:$0xf]
    %v40 = vld [vmem:[%s1 + $0x60] sm:$0xf]
    %v41 = vld [vmem:[%s1 + $0x64] sm:$0xf]
    %v42 = vld [vmem:[%s1 + $0x68] sm:$0xf]
    %v43 = vld [vmem:[%s1 + $0x6c] sm:$0xf]
    %v44 = vld [vmem:[%s1 + $0x70] sm:$0xf]
    %v45 = vld [vmem:[%s1 + $0x74] sm:$0xf]
    %v46 = vld [vmem:[%s1 + $0x78] sm:$0xf]
    %v47 = vld [vmem:[%s1 + $0x7c] sm:$0xf]
    %v48 = vld [vmem:[%s2] sm:$0x1]
    %v50 = vperm.slane %v48, 0
    %53 = vst [vmem:[#allocation1] ss:$9 sm:$0xff] %v15
    %v54 = vld [vmem:[#allocation1] sm:$0xff]
    %v55 = vld [vmem:[#allocation1 + $0x9] sm:$0xff]
    %v90 = vunpack.c.l.b16 %v16
    %v91 = vunpack.c.l.b16 %v17
    %v92 = vunpack.c.l.b16 %v18
    %v93 = vunpack.c.l.b16 %v19
    %v94 = vunpack.c.l.b16 %v20
    %v95 = vunpack.c.l.b16 %v21
    %v96 = vunpack.c.l.b16 %v22
    %v97 = vunpack.c.l.b16 %v23
    %v98 = vunpack.c.l.b16 %v24
    %v99 = vunpack.c.l.b16 %v25
    %v100 = vunpack.c.l.b16 %v26
    %v101 = vunpack.c.l.b16 %v27
    %v102 = vunpack.c.l.b16 %v28
    %v103 = vunpack.c.l.b16 %v29
    %v104 = vunpack.c.l.b16 %v30
    %v105 = vunpack.c.l.b16 %v31
    %v106 = vunpack.c.l.b16 %v32
    %v107 = vunpack.c.l.b16 %v33
    %v108 = vunpack.c.l.b16 %v34
    %v109 = vunpack.c.l.b16 %v35
    %v110 = vunpack.c.l.b16 %v36
    %v111 = vunpack.c.l.b16 %v37
    %v112 = vunpack.c.l.b16 %v38
    %v113 = vunpack.c.l.b16 %v39
    %v114 = vunpack.c.l.b16 %v40
    %v115 = vunpack.c.l.b16 %v41
    %v116 = vunpack.c.l.b16 %v42
    %v117 = vunpack.c.l.b16 %v43
    %v118 = vunpack.c.l.b16 %v44
    %v119 = vunpack.c.l.b16 %v45
    %v120 = vunpack.c.l.b16 %v46
    %v121 = vunpack.c.l.b16 %v47
    %v122 = vpack.c.b16 %v91, %v90
    %v123 = vpack.c.b16 %v93, %v92
    %v124 = vpack.c.b16 %v95, %v94
    %v125 = vpack.c.b16 %v97, %v96
    %v126 = vpack.c.b16 %v99, %v98
    %v127 = vpack.c.b16 %v101, %v100
    %v128 = vpack.c.b16 %v103, %v102
    %v129 = vpack.c.b16 %v105, %v104
    %v130 = vpack.c.b16 %v107, %v106
    %v131 = vpack.c.b16 %v109, %v108
    %v132 = vpack.c.b16 %v111, %v110
    %v133 = vpack.c.b16 %v113, %v112
    %v134 = vpack.c.b16 %v115, %v114
    %v135 = vpack.c.b16 %v117, %v116
    %v136 = vpack.c.b16 %v119, %v118
    %v137 = vpack.c.b16 %v121, %v120
    %154 = vmatpush.bf16.msra.mxu0 %v129
    %155 = vmatpush.bf16.msra.mxu0 %v128
    %156 = vmatpush.bf16.msra.mxu0 %v127
    %157 = vmatpush.bf16.msra.mxu0 %v126
    %158 = vmatpush.bf16.msra.mxu0 %v125
    %159 = vmatpush.bf16.msra.mxu0 %v124
    %160 = vmatpush.bf16.msra.mxu0 %v123
    %161 = vmatpush.bf16.msra.mxu0 %v122
    %162 = vmatmul.bf16.gmra.mxu0 %v54
    %v163 = vpop.f32.mrf.mxu0
    %v164 = vadd.f32 %v50, %v163
    %v165 = vpop.f32.mrf.mxu0
    %166 = vdwg.mxu0
    %167 = vmatpush.bf16.msra.mxu0 %v137
    %168 = vmatpush.bf16.msra.mxu0 %v136
    %169 = vmatpush.bf16.msra.mxu0 %v135
    %170 = vmatpush.bf16.msra.mxu0 %v134
    %171 = vmatpush.bf16.msra.mxu0 %v133
    %172 = vmatpush.bf16.msra.mxu0 %v132
    %173 = vmatpush.bf16.msra.mxu0 %v131
    %174 = vmatpush.bf16.msra.mxu0 %v130
    %175 = vmatmul.bf16.gmra.mxu0 %v55
    %v176 = vpop.f32.mrf.mxu0
    %v177 = vadd.f32 %v164, %v176
    %v178 = vpop.f32.mrf.mxu0
    %179 = vdwg.mxu0
    %180 = vst [vmem:[#allocation2] sm:$0x3] %v177
    // Predicated region
    $region14: #{encoder_forward.3} parent=1 // pred_check
      _
    $region15: #{encoder_forward.3} parent=1 // pred_check_branch
      %182 = sbr.rel (0) target = $region17
    $region16: #{encoder_forward.3} parent=1 // pred_region
      %184 = vsyncadd [#allocation3], 0
      %s186 = sshll.u32 [#allocation2], 4
      %s187 = int_to_ptr.vmem [resolvable:$true] %s186
      %s188 = sshll.u32 %s3, 4
      %s189 = int_to_ptr.hbm [resolvable:$true] %s188
      %191 = dma.vmem_to_hbm [thread:$0]  %s187, 32, %s189, [#allocation3]
    $region17: #{encoder_forward.3} parent=1 // pred_fallthru
      _
    // Predicated region
    $region18: #{encoder_forward.3} parent=1 // pred_check
      _
    $region19: #{encoder_forward.3} parent=1 // pred_check_branch
      %193 = sbr.rel (0) target = $region21
    $region20: #{encoder_forward.3} parent=1 // pred_region
      %195 = dma.done [#allocation3], 32
    $region21: #{encoder_forward.3} parent=1 // pred_fallthru
      _
    %196 = vsyncpa [#allocation3], 1

// kernel: encoder_forward.2
$region0: #{encoder_forward.2}
  #allocation0 [shape = 'u32[]', space=smem, size = 0x4, offset = 0x4, fixed_abs, tag = 'smem constant byte address 0x4 - core index']
  #allocation1 [shape = 'u32[72,128]{1,0:T(1,128)}', space=vmem, size = 0x9000, scoped, tag = 'internal scratch']
  %s0 = inlined_call_operand.vmem [shape: bf16[2,64,64], index: 0, kind: input, shape index: {}]
  %s1 = inlined_call_operand.vmem [shape: bf16[256,16], index: 1, kind: input, shape index: {}]
  %s2 = inlined_call_operand.vmem [shape: f32[1,16], index: 2, kind: input, shape index: {}]
  %s3 = inlined_call_operand.vmem [shape: bf16[8,19], index: 3, kind: input, shape index: {}]
  %s4 = inlined_call_operand.vmem [shape: bf16[256,32], index: 4, kind: input, shape index: {}]
  %s5 = inlined_call_operand.vmem [shape: f32[1,32], index: 5, kind: input, shape index: {}]
  %s6 = inlined_call_operand.vmem [shape: bf16[2,8,32], index: 6, kind: output, shape index: {}]
  %s7 = sld [smem:[#allocation0]]
  $region57: #{encoder_forward.2} parent=0
    _
  %s9 = ssub.s32 1, %s7
  %s10 = scalar_select 0, %s9, %s7
  loop: start=0, step=1, limit=4
  $region2: #{encoder_forward.2} parent=0 // loop_pre_header
    _
  $region3: #{encoder_forward.2} parent=0 // loop_header
    %s12 = sphi 0, %s16
    %p13 = scmp.ge.s32.totalorder %s12, 4
    %s22 = sphi 0, %s24
    %s25 = sphi 0, %s22
    %s26 = sphi 0, %s25
    %s42 = sphi 0, %s26
    %s46 = sphi 0, %s46
    %s48 = sphi 0, %s46
    %s49 = sphi 0, %s48
    %s63 = sphi 0, %s49
    %s67 = sphi 0, %s67
    %s69 = sphi 0, %s67
    %s70 = sphi 0, %s69
    %s84 = sphi 0, %s70
    %s88 = sphi 0, %s88
    %s90 = sphi 0, %s88
    %s91 = sphi 0, %s90
    %s105 = sphi 0, %s91
    %s109 = sphi 0, %s109
    %s111 = sphi 0, %s109
    %s112 = sphi 0, %s111
    %s126 = sphi 0, %s112
    %s130 = sphi 0, %s130
    %s132 = sphi 0, %s130
    %s133 = sphi 0, %s132
    %s147 = sphi 0, %s133
    %s153 = sphi 0, %s155
    %s156 = sphi 0, %s153
    %s157 = sphi 0, %s156
    %s173 = sphi 0, %s157
  $region4: #{encoder_forward.2} parent=0 // loop_header_branch
    %15 = sbr.rel (%p13) target = $region8
  $region5: #{encoder_forward.2} parent=0 // loop_body
    %s17 = ssub.s32 %s12, 1
    %s18 = ssub.s32 %s12, 2
    %s19 = sadd.s32 %s12, 1
    %s20 = ssub.s32 %s12, %s19
    %p21 = scmp.eq.s32.totalorder %s20, 0
    %s23 = sadd.s32 %s22, 1
    %s24 = scalar_select %p21, %s22, %s23
    %p27 = pneg %p21
    %p28 = scmp.eq.s32.totalorder %s12, 1
    %p29 = por %p27, %p28
    %p30 = scmp.ne.s32.totalorder %s22, %s25
    %p31 = scmp.eq.s32.totalorder %s12, 0
    %p32 = por %p30, %p31
    %p33 = scmp.ne.s32.totalorder %s22, %s25
    %p34 = scmp.eq.s32.totalorder %s17, 1
    %p35 = por %p33, %p34
    %p36 = scmp.ne.s32.totalorder %s25, %s26
    %p37 = scmp.eq.s32.totalorder %s17, 0
    %p38 = por %p36, %p37
    %p39 = scmp.ne.s32.totalorder %s25, %s26
    %p40 = scmp.eq.s32.totalorder %s18, 1
    %p41 = por %p39, %p40
    %p43 = scmp.ne.s32.totalorder %s26, %s42
    %p44 = scmp.eq.s32.totalorder %s18, 0
    %p45 = por %p43, %p44
    %s47 = sadd.s32 %s46, 1
    %p50 = scmp.eq.s32.totalorder %s12, 1
    %p51 = scmp.ne.s32.totalorder %s46, %s48
    %p52 = scmp.eq.s32.totalorder %s12, 0
    %p53 = por %p51, %p52
    %p54 = scmp.ne.s32.totalorder %s46, %s48
    %p55 = scmp.eq.s32.totalorder %s17, 1
    %p56 = por %p54, %p55
    %p57 = scmp.ne.s32.totalorder %s48, %s49
    %p58 = scmp.eq.s32.totalorder %s17, 0
    %p59 = por %p57, %p58
    %p60 = scmp.ne.s32.totalorder %s48, %s49
    %p61 = scmp.eq.s32.totalorder %s18, 1
    %p62 = por %p60, %p61
    %p64 = scmp.ne.s32.totalorder %s49, %s63
    %p65 = scmp.eq.s32.totalorder %s18, 0
    %p66 = por %p64, %p65
    %s68 = sadd.s32 %s67, 1
    %p71 = scmp.eq.s32.totalorder %s12, 1
    %p72 = scmp.ne.s32.totalorder %s67, %s69
    %p73 = scmp.eq.s32.totalorder %s12, 0
    %p74 = por %p72, %p73
    %p75 = scmp.ne.s32.totalorder %s67, %s69
    %p76 = scmp.eq.s32.totalorder %s17, 1
    %p77 = por %p75, %p76
    %p78 = scmp.ne.s32.totalorder %s69, %s70
    %p79 = scmp.eq.s32.totalorder %s17, 0
    %p80 = por %p78, %p79
    %p81 = scmp.ne.s32.totalorder %s69, %s70
    %p82 = scmp.eq.s32.totalorder %s18, 1
    %p83 = por %p81, %p82
    %p85 = scmp.ne.s32.totalorder %s70, %s84
    %p86 = scmp.eq.s32.totalorder %s18, 0
    %p87 = por %p85, %p86
    %s89 = sadd.s32 %s88, 1
    %p92 = scmp.eq.s32.totalorder %s12, 1
    %p93 = scmp.ne.s32.totalorder %s88, %s90
    %p94 = scmp.eq.s32.totalorder %s12, 0
    %p95 = por %p93, %p94
    %p96 = scmp.ne.s32.totalorder %s88, %s90
    %p97 = scmp.eq.s32.totalorder %s17, 1
    %p98 = por %p96, %p97
    %p99 = scmp.ne.s32.totalorder %s90, %s91
    %p100 = scmp.eq.s32.totalorder %s17, 0
    %p101 = por %p99, %p100
    %p102 = scmp.ne.s32.totalorder %s90, %s91
    %p103 = scmp.eq.s32.totalorder %s18, 1
    %p104 = por %p102, %p103
    %p106 = scmp.ne.s32.totalorder %s91, %s105
    %p107 = scmp.eq.s32.totalorder %s18, 0
    %p108 = por %p106, %p107
    %s110 = sadd.s32 %s109, 1
    %p113 = scmp.eq.s32.totalorder %s12, 1
    %p114 = scmp.ne.s32.totalorder %s109, %s111
    %p115 = scmp.eq.s32.totalorder %s12, 0
    %p116 = por %p114, %p115
    %p117 = scmp.ne.s32.totalorder %s109, %s111
    %p118 = scmp.eq.s32.totalorder %s17, 1
    %p119 = por %p117, %p118
    %p120 = scmp.ne.s32.totalorder %s111, %s112
    %p121 = scmp.eq.s32.totalorder %s17, 0
    %p122 = por %p120, %p121
    %p123 = scmp.ne.s32.totalorder %s111, %s112
    %p124 = scmp.eq.s32.totalorder %s18, 1
    %p125 = por %p123, %p124
    %p127 = scmp.ne.s32.totalorder %s112, %s126
    %p128 = scmp.eq.s32.totalorder %s18, 0
    %p129 = por %p127, %p128
    %s131 = sadd.s32 %s130, 1
    %p134 = scmp.eq.s32.totalorder %s12, 1
    %p135 = scmp.ne.s32.totalorder %s130, %s132
    %p136 = scmp.eq.s32.totalorder %s12, 0
    %p137 = por %p135, %p136
    %p138 = scmp.ne.s32.totalorder %s130, %s132
    %p139 = scmp.eq.s32.totalorder %s17, 1
    %p140 = por %p138, %p139
    %p141 = scmp.ne.s32.totalorder %s132, %s133
    %p142 = scmp.eq.s32.totalorder %s17, 0
    %p143 = por %p141, %p142
    %p144 = scmp.ne.s32.totalorder %s132, %s133
    %p145 = scmp.eq.s32.totalorder %s18, 1
    %p146 = por %p144, %p145
    %p148 = scmp.ne.s32.totalorder %s133, %s147
    %p149 = scmp.eq.s32.totalorder %s18, 0
    %p150 = por %p148, %p149
    %s151 = ssub.s32 %s12, %s19
    %p152 = scmp.eq.s32.totalorder %s151, 0
    %s154 = sadd.s32 %s153, 1
    %s155 = scalar_select %p152, %s153, %s154
    %p158 = pneg %p152
    %p159 = scmp.eq.s32.totalorder %s12, 1
    %p160 = por %p158, %p159
    %p161 = scmp.ne.s32.totalorder %s153, %s156
    %p162 = scmp.eq.s32.totalorder %s12, 0
    %p163 = por %p161, %p162
    %p164 = scmp.ne.s32.totalorder %s153, %s156
    %p165 = scmp.eq.s32.totalorder %s17, 1
    %p166 = por %p164, %p165
    %p167 = scmp.ne.s32.totalorder %s156, %s157
    %p168 = scmp.eq.s32.totalorder %s17, 0
    %p169 = por %p167, %p168
    %p170 = scmp.ne.s32.totalorder %s156, %s157
    %p171 = scmp.eq.s32.totalorder %s18, 1
    %p172 = por %p170, %p171
    %p174 = scmp.ne.s32.totalorder %s157, %s173
    %p175 = scmp.eq.s32.totalorder %s18, 0
    %p176 = por %p174, %p175
    %p177 = scmp.le.s32.totalorder 1, %s12
    %p178 = scmp.lt.s32.totalorder %s12, 3
    %p179 = pnand %p177, %p178
    %p180 = pneg %p179
    // Predicated region
    $region9: #{encoder_forward.2} parent=5 // pred_check
      _
    $region10: #{encoder_forward.2} parent=5 // pred_check_branch
      %182 = sbr.rel (%p179) target = $region12
    $region11: #{encoder_forward.2} parent=5 // pred_region
      %s183 = ssub.s32 %s12, 1
      // Predicated region
      $region13: #{encoder_forward.2} parent=11 // pred_check
        %p184 = pneg %p59
      $region14: #{encoder_forward.2} parent=11 // pred_check_branch
        %186 = sbr.rel (%p184) target = $region16
      $region15: #{encoder_forward.2} parent=11 // pred_region
        _
      $region16: #{encoder_forward.2} parent=11 // pred_fallthru
        _
      // Predicated region
      $region17: #{encoder_forward.2} parent=11 // pred_check
        %p187 = pneg %p80
      $region18: #{encoder_forward.2} parent=11 // pred_check_branch
        %189 = sbr.rel (%p187) target = $region20
      $region19: #{encoder_forward.2} parent=11 // pred_region
        _
      $region20: #{encoder_forward.2} parent=11 // pred_fallthru
        _
      // Predicated region
      $region21: #{encoder_forward.2} parent=11 // pred_check
        %p190 = pneg %p101
      $region22: #{encoder_forward.2} parent=11 // pred_check_branch
        %192 = sbr.rel (%p190) target = $region24
      $region23: #{encoder_forward.2} parent=11 // pred_region
        _
      $region24: #{encoder_forward.2} parent=11 // pred_fallthru
        _
      // Predicated region
      $region25: #{encoder_forward.2} parent=11 // pred_check
        %p193 = pneg %p122
      $region26: #{encoder_forward.2} parent=11 // pred_check_branch
        %195 = sbr.rel (%p193) target = $region28
      $region27: #{encoder_forward.2} parent=11 // pred_region
        _
      $region28: #{encoder_forward.2} parent=11 // pred_fallthru
        _
      // Predicated region
      $region29: #{encoder_forward.2} parent=11 // pred_check
        %p196 = pneg %p143
      $region30: #{encoder_forward.2} parent=11 // pred_check_branch
        %198 = sbr.rel (%p196) target = $region32
      $region31: #{encoder_forward.2} parent=11 // pred_region
        _
      $region32: #{encoder_forward.2} parent=11 // pred_fallthru
        _
    $region12: #{encoder_forward.2} parent=5 // pred_fallthru
      _
    %p199 = scmp.lt.s32.totalorder %s12, 2
    // Predicated region
    $region33: #{encoder_forward.2} parent=5 // pred_check
      %p200 = pneg %p199
    $region34: #{encoder_forward.2} parent=5 // pred_check_branch
      %202 = sbr.rel (%p200) target = $region36
    $region35: #{encoder_forward.2} parent=5 // pred_region
      // Predicated region
      $region37: #{encoder_forward.2} parent=35 // pred_check
        %p203 = pneg %p32
      $region38: #{encoder_forward.2} parent=35 // pred_check_branch
        %205 = sbr.rel (%p203) target = $region40
      $region39: #{encoder_forward.2} parent=35 // pred_region
        %p206 = scmp.lt.s32.totalorder %s12, 1
        %s207 = scalar_select %p206, %s12, 1
        %s208 = smul.addr %s207, 8
        %s209 = smul.addr %s208, 4
        %s210 = scalar_lea.vmem %s0, %s209
      $region40: #{encoder_forward.2} parent=35 // pred_fallthru
        _
    $region36: #{encoder_forward.2} parent=5 // pred_fallthru
      _
    %p211 = scmp.le.s32.totalorder 1, %s12
    %p212 = scmp.lt.s32.totalorder %s12, 3
    %p213 = pnand %p211, %p212
    %p214 = pneg %p213
    // Predicated region
    $region41: #{encoder_forward.2} parent=5 // pred_check
      _
    $region42: #{encoder_forward.2} parent=5 // pred_check_branch
      %216 = sbr.rel (%p213) target = $region44
    $region43: #{encoder_forward.2} parent=5 // pred_region
      %s217 = ssub.s32 %s12, 1
      %p218 = scmp.lt.s32.totalorder %s17, 1
      %s219 = scalar_select %p218, %s17, 1
      %s220 = smul.addr %s219, 8
      %s221 = smul.addr %s220, 4
      %s222 = scalar_lea.vmem %s0, %s221
      %p223 = pneg %p38
      %p224 = pneg %p35
      %p225 = pneg %p59
      %p226 = pneg %p56
      %p227 = pneg %p80
      %p228 = pneg %p77
      %p229 = pneg %p101
      %p230 = pneg %p98
      %p231 = pneg %p122
      %p232 = pneg %p119
      %p233 = pneg %p143
      %p234 = pneg %p140
      %p235 = pneg %p169
      %p236 = pneg %p166
      %p237 = scmp.lt.s32.totalorder %s17, 1
      %s238 = scalar_select %p237, %s17, 1
      %s239 = smul.addr %s238, 4
      %s240 = scalar_lea.vmem %s6, %s239
      %p241 = scmp.lt.s32.totalorder %s17, 1
      %s242 = scalar_select %p241, %s17, 1
      %s243 = smul.addr %s242, 8
      %s244 = smul.addr %s243, 4
      %s245 = scalar_lea.vmem %s0, %s244
      %p246 = scmp.lt.s32.totalorder %s17, 1
      %s247 = scalar_select %p246, %s17, 1
      %s248 = smul.addr %s247, 4
      %s249 = scalar_lea.vmem %s6, %s248
      %v251 = vld [vmem:[%s245] sm:$0xf]
      %v252 = vld [vmem:[%s245 + $0x4] sm:$0xf]
      %v253 = vld [vmem:[%s245 + $0x8] sm:$0xf]
      %v254 = vld [vmem:[%s245 + $0xc] sm:$0xf]
      %v255 = vld [vmem:[%s245 + $0x10] sm:$0xf]
      %v256 = vld [vmem:[%s245 + $0x14] sm:$0x7]
      %v257 = vld [vmem:[%s245 + $0x14] sm:$0xf]
      %v258 = vld [vmem:[%s245 + $0x18] sm:$0x7]
      %v259 = vld [vmem:[%s245 + $0x18] sm:$0xf]
      %v266 = vunpack.c.l.b16 %v251
      %v267 = vunpack.c.l.b16 %v252
      %v268 = vunpack.c.l.b16 %v253
      %v269 = vunpack.c.l.b16 %v254
      %v270 = vunpack.c.l.b16 %v255
      %v271 = vunpack.c.l.b16 %v256
      %v272 = vpack.c.b16 %v267, %v266
      %v273 = vpack.c.b16 %v269, %v268
      %v274 = vpack.c.b16 %v271, %v270
      %v276 = vunpack.c.l.b16 %v257
      %v277 = vpack.c.b16 %v276, %v270
      %vm278 = vsmask.f32 7424
      %v280 = vshrl.u32 %v272, 16
      %v282 = vshll.u32 %v272, 16
      %v284 = vrot.slane %v282, 1
      %v285 = vor.u32 %v280, %v284
      %v287 = vshll.u32 %v273, 16
      %v289 = vrot.slane %v287, 1
      %v290 = vsel %vm278, %v285, %v289
      %v291 = vshrl.u32 %v273, 16
      %v293 = vor.u32 %v291, %v289
      %v295 = vshll.u32 %v277, 16
      %v297 = vrot.slane %v295, 1
      %v298 = vsel %vm278, %v293, %v297
      %v299 = vshrl.u32 %v277, 16
      %v301 = vor.u32 %v299, %v297
      %302 = vrot.lane.b32.xlu0 %v290, 64
      %v303 = vpop.permute.xlu0 %302
      %304 = vrot.lane.b32.xlu0 %v298, 64
      %v305 = vpop.permute.xlu0 %304
      %306 = vrot.lane.b32.xlu0 %v301, 64
      %v307 = vpop.permute.xlu0 %306
      %v309 = vunpack.c.l.b16 %v258
      %v310 = vpack.c.b16 %v268, %v267
      %v311 = vpack.c.b16 %v270, %v269
      %v312 = vpack.c.b16 %v309, %v276
      %v314 = vunpack.c.l.b16 %v259
      %v315 = vpack.c.b16 %v314, %v276
      %v317 = vshrl.u32 %v310, 16
      %v319 = vshll.u32 %v310, 16
      %v321 = vrot.slane %v319, 1
      %v322 = vor.u32 %v317, %v321
      %v324 = vshll.u32 %v311, 16
      %v326 = vrot.slane %v324, 1
      %v327 = vsel %vm278, %v322, %v326
      %v328 = vshrl.u32 %v311, 16
      %v330 = vor.u32 %v328, %v326
      %v332 = vshll.u32 %v315, 16
      %v334 = vrot.slane %v332, 1
      %v335 = vsel %vm278, %v330, %v334
      %v336 = vshrl.u32 %v315, 16
      %v338 = vor.u32 %v336, %v334
      %339 = vrot.lane.b32.xlu0 %v327, 64
      %v340 = vpop.permute.xlu0 %339
      %341 = vrot.lane.b32.xlu0 %v335, 64
      %v342 = vpop.permute.xlu0 %341
      %343 = vrot.lane.b32.xlu0 %v338, 64
      %v344 = vpop.permute.xlu0 %343
      %vm345 = vcmask 523264
      %v347 = vsel %vm345, %v272, %v303
      %v350 = vsel %vm345, %v273, %v305
      %v354 = vsel %vm345, %v274, %v307
      %v357 = vsel %vm345, %v310, %v340
      %v360 = vsel %vm345, %v311, %v342
      %v364 = vsel %vm345, %v312, %v344
      %v366 = vld [vmem:[%s1] sm:$0xf]
      %v367 = vld [vmem:[%s1 + $0x4] sm:$0xf]
      %v368 = vld [vmem:[%s1 + $0x8] sm:$0xf]
      %v369 = vld [vmem:[%s1 + $0xc] sm:$0xf]
      %v370 = vld [vmem:[%s1 + $0x10] sm:$0xf]
      %v371 = vld [vmem:[%s1 + $0x14] sm:$0xf]
      %v372 = vld [vmem:[%s1 + $0x18] sm:$0xf]
      %v373 = vld [vmem:[%s1 + $0x1c] sm:$0xf]
      %v374 = vld [vmem:[%s1 + $0x20] sm:$0xf]
      %v375 = vld [vmem:[%s1 + $0x24] sm:$0xf]
      %v376 = vld [vmem:[%s1 + $0x28] sm:$0xf]
      %v377 = vld [vmem:[%s1 + $0x2c] sm:$0xf]
      %v378 = vld [vmem:[%s1 + $0x30] sm:$0xf]
      %v379 = vld [vmem:[%s1 + $0x34] sm:$0xf]
      %v380 = vld [vmem:[%s1 + $0x38] sm:$0xf]
      %v381 = vld [vmem:[%s1 + $0x3c] sm:$0xf]
      %v382 = vld [vmem:[%s1 + $0x40] sm:$0xf]
      %v383 = vld [vmem:[%s1 + $0x44] sm:$0xf]
      %v384 = vld [vmem:[%s1 + $0x48] sm:$0xf]
      %v385 = vld [vmem:[%s1 + $0x4c] sm:$0xf]
      %v386 = vld [vmem:[%s1 + $0x50] sm:$0xf]
      %v387 = vld [vmem:[%s1 + $0x54] sm:$0xf]
      %v388 = vld [vmem:[%s1 + $0x58] sm:$0xf]
      %v389 = vld [vmem:[%s1 + $0x5c] sm:$0xf]
      %v390 = vld [vmem:[%s1 + $0x60] sm:$0xf]
      %v391 = vld [vmem:[%s1 + $0x64] sm:$0xf]
      %v392 = vld [vmem:[%s1 + $0x68] sm:$0xf]
      %v393 = vld [vmem:[%s1 + $0x6c] sm:$0xf]
      %v394 = vld [vmem:[%s1 + $0x70] sm:$0xf]
      %v395 = vld [vmem:[%s1 + $0x74] sm:$0xf]
      %v396 = vld [vmem:[%s1 + $0x78] sm:$0xf]
      %v397 = vld [vmem:[%s1 + $0x7c] sm:$0xf]
      %v398 = vld [vmem:[%s2] sm:$0x1]
      %v400 = vperm.slane %v398, 0
      %v434 = vunpack.c.l.b16 %v366
      %v435 = vunpack.c.l.b16 %v367
      %v436 = vunpack.c.l.b16 %v368
      %v437 = vunpack.c.l.b16 %v369
      %v438 = vunpack.c.l.b16 %v370
      %v439 = vunpack.c.l.b16 %v371
      %v440 = vunpack.c.l.b16 %v372
      %v441 = vunpack.c.l.b16 %v373
      %v442 = vunpack.c.l.b16 %v374
      %v443 = vunpack.c.l.b16 %v375
      %v444 = vunpack.c.l.b16 %v376
      %v445 = vunpack.c.l.b16 %v377
      %v446 = vunpack.c.l.b16 %v378
      %v447 = vunpack.c.l.b16 %v379
      %v448 = vunpack.c.l.b16 %v380
      %v449 = vunpack.c.l.b16 %v381
      %v450 = vunpack.c.l.b16 %v382
      %v451 = vunpack.c.l.b16 %v383
      %v452 = vunpack.c.l.b16 %v384
      %v453 = vunpack.c.l.b16 %v385
      %v454 = vunpack.c.l.b16 %v386
      %v455 = vunpack.c.l.b16 %v387
      %v456 = vunpack.c.l.b16 %v388
      %v457 = vunpack.c.l.b16 %v389
      %v458 = vunpack.c.l.b16 %v390
      %v459 = vunpack.c.l.b16 %v391
      %v460 = vunpack.c.l.b16 %v392
      %v461 = vunpack.c.l.b16 %v393
      %v462 = vunpack.c.l.b16 %v394
      %v463 = vunpack.c.l.b16 %v395
      %v464 = vunpack.c.l.b16 %v396
      %v465 = vunpack.c.l.b16 %v397
      %v466 = vpack.c.b16 %v435, %v434
      %v467 = vpack.c.b16 %v437, %v436
      %v468 = vpack.c.b16 %v439, %v438
      %v469 = vpack.c.b16 %v441, %v440
      %v470 = vpack.c.b16 %v443, %v442
      %v471 = vpack.c.b16 %v445, %v444
      %v472 = vpack.c.b16 %v447, %v446
      %v473 = vpack.c.b16 %v449, %v448
      %v474 = vpack.c.b16 %v451, %v450
      %v475 = vpack.c.b16 %v453, %v452
      %v476 = vpack.c.b16 %v455, %v454
      %v477 = vpack.c.b16 %v457, %v456
      %v478 = vpack.c.b16 %v459, %v458
      %v479 = vpack.c.b16 %v461, %v460
      %v480 = vpack.c.b16 %v463, %v462
      %v481 = vpack.c.b16 %v465, %v464
      %498 = vmatpush.bf16.msra.mxu0 %v473
      %499 = vmatpush.bf16.msra.mxu0 %v472
      %500 = vmatpush.bf16.msra.mxu0 %v471
      %501 = vmatpush.bf16.msra.mxu0 %v470
      %502 = vmatpush.bf16.msra.mxu0 %v469
      %503 = vmatpush.bf16.msra.mxu0 %v468
      %504 = vmatpush.bf16.msra.mxu0 %v467
      %505 = vmatpush.bf16.msra.mxu0 %v466
      %506 = vmatmul.bf16.gmra.mxu0 %v347
      %v507 = vpop.f32.mrf.mxu0
      %v508 = vadd.f32 %v400, %v507
      %v509 = vpop.f32.mrf.mxu0
      %v510 = vadd.f32 %v400, %v509
      %511 = vmatmul.bf16.gmra.mxu0 %v350
      %v512 = vpop.f32.mrf.mxu0
      %v513 = vadd.f32 %v400, %v512
      %v514 = vpop.f32.mrf.mxu0
      %v515 = vadd.f32 %v400, %v514
      %516 = vmatmul.bf16.gmra.mxu0 %v354
      %v517 = vpop.f32.mrf.mxu0
      %v518 = vadd.f32 %v400, %v517
      %v519 = vpop.f32.mrf.mxu0
      %v520 = vadd.f32 %v400, %v519
      %521 = vdwg.mxu0
      %522 = vmatpush.bf16.msra.mxu0 %v481
      %523 = vmatpush.bf16.msra.mxu0 %v480
      %524 = vmatpush.bf16.msra.mxu0 %v479
      %525 = vmatpush.bf16.msra.mxu0 %v478
      %526 = vmatpush.bf16.msra.mxu0 %v477
      %527 = vmatpush.bf16.msra.mxu0 %v476
      %528 = vmatpush.bf16.msra.mxu0 %v475
      %529 = vmatpush.bf16.msra.mxu0 %v474
      %530 = vmatmul.bf16.gmra.mxu0 %v357
      %v531 = vpop.f32.mrf.mxu0
      %v532 = vadd.f32 %v508, %v531
      %v533 = vpop.f32.mrf.mxu0
      %v534 = vadd.f32 %v510, %v533
      %535 = vmatmul.bf16.gmra.mxu0 %v360
      %v536 = vpop.f32.mrf.mxu0
      %v537 = vadd.f32 %v513, %v536
      %v538 = vpop.f32.mrf.mxu0
      %v539 = vadd.f32 %v515, %v538
      %540 = vmatmul.bf16.gmra.mxu0 %v364
      %v541 = vpop.f32.mrf.mxu0
      %v542 = vadd.f32 %v518, %v541
      %v543 = vpop.f32.mrf.mxu0
      %v544 = vadd.f32 %v520, %v543
      %545 = vdwg.mxu0
      %v546 = vmax.f32 %v532, 0.0
      %v547 = vmax.f32 %v534, 0.0
      %v548 = vmax.f32 %v537, 0.0
      %v549 = vmax.f32 %v539, 0.0
      %v550 = vmax.f32 %v542, 0.0
      %v551 = vmax.f32 %v544, 0.0
      %v552 = vpack.c.bf16 %v546, %v546
      %v553 = vpack.c.bf16 %v547, %v547
      %v554 = vpack.c.bf16 %v548, %v548
      %v555 = vpack.c.bf16 %v549, %v549
      %v556 = vpack.c.bf16 %v550, %v550
      %v557 = vpack.c.bf16 %v551, %v551
      %v561 = vunpack.c.l.b16 %v552
      %v562 = vunpack.c.l.b16 %v553
      %v563 = vunpack.c.l.b16 %v554
      %v564 = vpack.c.b16 %v562, %v561
      %v565 = vpack.c.b16 %v563, %v563
      %v567 = vshrl.u32 %v564, 16
      %v569 = vshll.u32 %v564, 16
      %v571 = vrot.slane %v569, 1
      %v572 = vor.u32 %v567, %v571
      %v574 = vshll.u32 %v565, 16
      %v576 = vrot.slane %v574, 1
      %v577 = vsel %vm278, %v572, %v576
      %v578 = vshrl.u32 %v565, 16
      %v580 = vor.u32 %v578, %v576
      %581 = vrot.lane.b32.xlu0 %v577, 16
      %v582 = vpop.permute.xlu0 %581
      %583 = vrot.lane.b32.xlu0 %v580, 16
      %v584 = vpop.permute.xlu0 %583
      %vm585 = vcmask 1046528
      %v586 = vrot.slane %v564, 1
      %v587 = vrot.slane %v565, 1
      %v588 = vsel %vm585, %v586, %v587
      %589 = vrot.lane.b32.xlu0 %v588, 32
      %v590 = vpop.permute.xlu0 %589
      %591 = vrot.lane.b32.xlu0 %v587, 32
      %v592 = vpop.permute.xlu0 %591
      %vm593 = vsmask.f32 6400
      %v594 = vrot.slane %v567, 1
      %v595 = vrot.slane %v569, 2
      %v596 = vor.u32 %v594, %v595
      %v597 = vrot.slane %v578, 1
      %v598 = vrot.slane %v574, 2
      %v599 = vor.u32 %v597, %v598
      %v600 = vsel %vm593, %v596, %v599
      %601 = vrot.lane.b32.xlu0 %v600, 48
      %v602 = vpop.permute.xlu0 %601
      %603 = vrot.lane.b32.xlu0 %v599, 48
      %v604 = vpop.permute.xlu0 %603
      %v606 = vunpack.c.l.b16 %v555
      %v607 = vpack.c.b16 %v563, %v562
      %v608 = vpack.c.b16 %v606, %v606
      %609 = vrot.lane.b32.xlu0 %v607, 64
      %v610 = vpop.permute.xlu0 %609
      %611 = vrot.lane.b32.xlu0 %v608, 64
      %v612 = vpop.permute.xlu0 %611
      %v614 = vshrl.u32 %v607, 16
      %v616 = vshll.u32 %v607, 16
      %v618 = vrot.slane %v616, 1
      %v619 = vor.u32 %v614, %v618
      %v621 = vshll.u32 %v608, 16
      %v623 = vrot.slane %v621, 1
      %v624 = vsel %vm278, %v619, %v623
      %v625 = vshrl.u32 %v608, 16
      %v627 = vor.u32 %v625, %v623
      %628 = vrot.lane.b32.xlu0 %v624, 80
      %v629 = vpop.permute.xlu0 %628
      %630 = vrot.lane.b32.xlu0 %v627, 80
      %v631 = vpop.permute.xlu0 %630
      %v632 = vrot.slane %v607, 1
      %v633 = vrot.slane %v608, 1
      %v634 = vsel %vm585, %v632, %v633
      %635 = vrot.lane.b32.xlu0 %v634, 96
      %v636 = vpop.permute.xlu0 %635
      %637 = vrot.lane.b32.xlu0 %v633, 96
      %v638 = vpop.permute.xlu0 %637
      %v639 = vrot.slane %v614, 1
      %v640 = vrot.slane %v616, 2
      %v641 = vor.u32 %v639, %v640
      %v642 = vrot.slane %v625, 1
      %v643 = vrot.slane %v621, 2
      %v644 = vor.u32 %v642, %v643
      %v645 = vsel %vm593, %v641, %v644
      %646 = vrot.lane.b32.xlu0 %v645, 112
      %v647 = vpop.permute.xlu0 %646
      %648 = vrot.lane.b32.xlu0 %v644, 112
      %v649 = vpop.permute.xlu0 %648
      %v651 = vunpack.c.l.b16 %v556
      %v652 = vpack.c.b16 %v606, %v563
      %v653 = vpack.c.b16 %v651, %v651
      %v655 = vshrl.u32 %v652, 16
      %v657 = vshll.u32 %v652, 16
      %v659 = vrot.slane %v657, 1
      %v660 = vor.u32 %v655, %v659
      %v662 = vshll.u32 %v653, 16
      %v664 = vrot.slane %v662, 1
      %v665 = vsel %vm278, %v660, %v664
      %v666 = vshrl.u32 %v653, 16
      %v668 = vor.u32 %v666, %v664
      %669 = vrot.lane.b32.xlu0 %v665, 16
      %v670 = vpop.permute.xlu0 %669
      %671 = vrot.lane.b32.xlu0 %v668, 16
      %v672 = vpop.permute.xlu0 %671
      %v673 = vrot.slane %v652, 1
      %v674 = vrot.slane %v653, 1
      %v675 = vsel %vm585, %v673, %v674
      %676 = vrot.lane.b32.xlu0 %v675, 32
      %v677 = vpop.permute.xlu0 %676
      %678 = vrot.lane.b32.xlu0 %v674, 32
      %v679 = vpop.permute.xlu0 %678
      %v680 = vrot.slane %v655, 1
      %v681 = vrot.slane %v657, 2
      %v682 = vor.u32 %v680, %v681
      %v683 = vrot.slane %v666, 1
      %v684 = vrot.slane %v662, 2
      %v685 = vor.u32 %v683, %v684
      %v686 = vsel %vm593, %v682, %v685
      %687 = vrot.lane.b32.xlu0 %v686, 48
      %v688 = vpop.permute.xlu0 %687
      %689 = vrot.lane.b32.xlu0 %v685, 48
      %v690 = vpop.permute.xlu0 %689
      %v692 = vunpack.c.l.b16 %v557
      %v693 = vpack.c.b16 %v651, %v606
      %v694 = vpack.c.b16 %v692, %v692
      %695 = vrot.lane.b32.xlu0 %v693, 64
      %v696 = vpop.permute.xlu0 %695
      %697 = vrot.lane.b32.xlu0 %v694, 64
      %v698 = vpop.permute.xlu0 %697
      %v700 = vshrl.u32 %v693, 16
      %v702 = vshll.u32 %v693, 16
      %v704 = vrot.slane %v702, 1
      %v705 = vor.u32 %v700, %v704
      %v707 = vshll.u32 %v694, 16
      %v709 = vrot.slane %v707, 1
      %v710 = vsel %vm278, %v705, %v709
      %v711 = vshrl.u32 %v694, 16
      %v713 = vor.u32 %v711, %v709
      %714 = vrot.lane.b32.xlu0 %v710, 80
      %v715 = vpop.permute.xlu0 %714
      %716 = vrot.lane.b32.xlu0 %v713, 80
      %v717 = vpop.permute.xlu0 %716
      %v718 = vrot.slane %v693, 1
      %v719 = vrot.slane %v694, 1
      %v720 = vsel %vm585, %v718, %v719
      %721 = vrot.lane.b32.xlu0 %v720, 96
      %v722 = vpop.permute.xlu0 %721
      %723 = vrot.lane.b32.xlu0 %v719, 96
      %v724 = vpop.permute.xlu0 %723
      %v725 = vrot.slane %v700, 1
      %v726 = vrot.slane %v702, 2
      %v727 = vor.u32 %v725, %v726
      %v728 = vrot.slane %v711, 1
      %v729 = vrot.slane %v707, 2
      %v730 = vor.u32 %v728, %v729
      %v731 = vsel %vm593, %v727, %v730
      %732 = vrot.lane.b32.xlu0 %v731, 112
      %v733 = vpop.permute.xlu0 %732
      %734 = vrot.lane.b32.xlu0 %v730, 112
      %v735 = vpop.permute.xlu0 %734
      %vm736 = vcmask 130048
      %v738 = vsel %vm736, %v564, %v582
      %v740 = vsel %vm736, %v565, %v584
      %vm741 = vcmask 261120
      %v743 = vsel %vm741, %v738, %v590
      %v745 = vsel %vm741, %v740, %v592
      %vm746 = vcmask 392192
      %v748 = vsel %vm746, %v743, %v602
      %v750 = vsel %vm746, %v745, %v604
      %v752 = vsel %vm345, %v748, %v610
      %v754 = vsel %vm345, %v750, %v612
      %vm755 = vcmask 654336
      %v757 = vsel %vm755, %v752, %v629
      %v759 = vsel %vm755, %v754, %v631
      %vm760 = vcmask 785408
      %v762 = vsel %vm760, %v757, %v636
      %v764 = vsel %vm760, %v759, %v638
      %vm765 = vcmask 916480
      %v767 = vsel %vm765, %v762, %v647
      %v770 = vsel %vm765, %v764, %v649
      %v772 = vsel %vm736, %v652, %v670
      %v774 = vsel %vm736, %v653, %v672
      %v776 = vsel %vm741, %v772, %v677
      %v778 = vsel %vm741, %v774, %v679
      %v780 = vsel %vm746, %v776, %v688
      %v782 = vsel %vm746, %v778, %v690
      %v784 = vsel %vm345, %v780, %v696
      %v786 = vsel %vm345, %v782, %v698
      %v788 = vsel %vm755, %v784, %v715
      %v790 = vsel %vm755, %v786, %v717
      %v792 = vsel %vm760, %v788, %v722
      %v794 = vsel %vm760, %v790, %v724
      %v796 = vsel %vm765, %v792, %v733
      %v799 = vsel %vm765, %v794, %v735
      %v800 = vld [vmem:[%s3] sm:$0xf]
      %vm801 = vcmask 154624
      %v803 = vsel %vm801, %v800, 0
      %vm805 = vcmask 1040384
      %vm806 = vcmask 1041408
      %v807 = vsel %vm805, 4294967295, 65535
      %v808 = vsel %vm806, %v807, 0
      %v809 = vand.u32 %v770, %v808
      %v811 = vand.u32 %v799, %v808
      %813 = vmatpush.bf16.msra.mxu0 0
      %814 = vmatpush.bf16.msra.mxu0 0
      %815 = vmatpush.bf16.msra.mxu0 0
      %816 = vmatpush.bf16.msra.mxu0 0
      %817 = vmatpush.bf16.msra.mxu0 0
      %818 = vmatpush.bf16.msra.mxu0 0
      %819 = vmatpush.bf16.msra.mxu0 %v809
      %820 = vmatpush.bf16.msra.mxu0 %v767
      %821 = vmatmul.bf16.gmra.mxu0 %v803
      %v822 = vpop.f32.mrf.mxu0
      %v823 = vadd.f32 0.0, %v822
      %v824 = vpop.f32.mrf.mxu0
      %825 = vdwg.mxu0
      %826 = vmatpush.bf16.msra.mxu0 0
      %827 = vmatpush.bf16.msra.mxu0 0
      %828 = vmatpush.bf16.msra.mxu0 0
      %829 = vmatpush.bf16.msra.mxu0 0
      %830 = vmatpush.bf16.msra.mxu0 0
      %831 = vmatpush.bf16.msra.mxu0 0
      %832 = vmatpush.bf16.msra.mxu0 %v811
      %833 = vmatpush.bf16.msra.mxu0 %v796
      %834 = vmatmul.bf16.gmra.mxu0 %v803
      %v835 = vpop.f32.mrf.mxu0
      %v836 = vadd.f32 0.0, %v835
      %v837 = vpop.f32.mrf.mxu0
      %838 = vdwg.mxu0
      %v839 = vpack.c.bf16 %v823, %v823
      %v840 = vpack.c.bf16 %v836, %v836
      %v841 = vld [vmem:[%s4] sm:$0xf]
      %v842 = vld [vmem:[%s4 + $0x4] sm:$0xf]
      %v843 = vld [vmem:[%s4 + $0x8] sm:$0xf]
      %v844 = vld [vmem:[%s4 + $0xc] sm:$0xf]
      %v845 = vld [vmem:[%s4 + $0x10] sm:$0xf]
      %v846 = vld [vmem:[%s4 + $0x14] sm:$0xf]
      %v847 = vld [vmem:[%s4 + $0x18] sm:$0xf]
      %v848 = vld [vmem:[%s4 + $0x1c] sm:$0xf]
      %v849 = vld [vmem:[%s4 + $0x20] sm:$0xf]
      %v850 = vld [vmem:[%s4 + $0x24] sm:$0xf]
      %v851 = vld [vmem:[%s4 + $0x28] sm:$0xf]
      %v852 = vld [vmem:[%s4 + $0x2c] sm:$0xf]
      %v853 = vld [vmem:[%s4 + $0x30] sm:$0xf]
      %v854 = vld [vmem:[%s4 + $0x34] sm:$0xf]
      %v855 = vld [vmem:[%s4 + $0x38] sm:$0xf]
      %v856 = vld [vmem:[%s4 + $0x3c] sm:$0xf]
      %v857 = vld [vmem:[%s4 + $0x40] sm:$0xf]
      %v858 = vld [vmem:[%s4 + $0x44] sm:$0xf]
      %v859 = vld [vmem:[%s4 + $0x48] sm:$0xf]
      %v860 = vld [vmem:[%s4 + $0x4c] sm:$0xf]
      %v861 = vld [vmem:[%s4 + $0x50] sm:$0xf]
      %v862 = vld [vmem:[%s4 + $0x54] sm:$0xf]
      %v863 = vld [vmem:[%s4 + $0x58] sm:$0xf]
      %v864 = vld [vmem:[%s4 + $0x5c] sm:$0xf]
      %v865 = vld [vmem:[%s4 + $0x60] sm:$0xf]
      %v866 = vld [vmem:[%s4 + $0x64] sm:$0xf]
      %v867 = vld [vmem:[%s4 + $0x68] sm:$0xf]
      %v868 = vld [vmem:[%s4 + $0x6c] sm:$0xf]
      %v869 = vld [vmem:[%s4 + $0x70] sm:$0xf]
      %v870 = vld [vmem:[%s4 + $0x74] sm:$0xf]
      %v871 = vld [vmem:[%s4 + $0x78] sm:$0xf]
      %v872 = vld [vmem:[%s4 + $0x7c] sm:$0xf]
      %v873 = vld [vmem:[%s5] sm:$0x1]
      %v875 = vperm.slane %v873, 0
      %v909 = vunpack.c.l.b16 %v841
      %v910 = vunpack.c.l.b16 %v842
      %v911 = vunpack.c.l.b16 %v843
      %v912 = vunpack.c.l.b16 %v844
      %v913 = vunpack.c.l.b16 %v845
      %v914 = vunpack.c.l.b16 %v846
      %v915 = vunpack.c.l.b16 %v847
      %v916 = vunpack.c.l.b16 %v848
      %v917 = vunpack.c.l.b16 %v849
      %v918 = vunpack.c.l.b16 %v850
      %v919 = vunpack.c.l.b16 %v851
      %v920 = vunpack.c.l.b16 %v852
      %v921 = vunpack.c.l.b16 %v853
      %v922 = vunpack.c.l.b16 %v854
      %v923 = vunpack.c.l.b16 %v855
      %v924 = vunpack.c.l.b16 %v856
      %v925 = vunpack.c.l.b16 %v857
      %v926 = vunpack.c.l.b16 %v858
      %v927 = vunpack.c.l.b16 %v859
      %v928 = vunpack.c.l.b16 %v860
      %v929 = vunpack.c.l.b16 %v861
      %v930 = vunpack.c.l.b16 %v862
      %v931 = vunpack.c.l.b16 %v863
      %v932 = vunpack.c.l.b16 %v864
      %v933 = vunpack.c.l.b16 %v865
      %v934 = vunpack.c.l.b16 %v866
      %v935 = vunpack.c.l.b16 %v867
      %v936 = vunpack.c.l.b16 %v868
      %v937 = vunpack.c.l.b16 %v869
      %v938 = vunpack.c.l.b16 %v870
      %v939 = vunpack.c.l.b16 %v871
      %v940 = vunpack.c.l.b16 %v872
      %v941 = vpack.c.b16 %v910, %v909
      %v942 = vpack.c.b16 %v912, %v911
      %v943 = vpack.c.b16 %v914, %v913
      %v944 = vpack.c.b16 %v916, %v915
      %v945 = vpack.c.b16 %v918, %v917
      %v946 = vpack.c.b16 %v920, %v919
      %v947 = vpack.c.b16 %v922, %v921
      %v948 = vpack.c.b16 %v924, %v923
      %v949 = vpack.c.b16 %v926, %v925
      %v950 = vpack.c.b16 %v928, %v927
      %v951 = vpack.c.b16 %v930, %v929
      %v952 = vpack.c.b16 %v932, %v931
      %v953 = vpack.c.b16 %v934, %v933
      %v954 = vpack.c.b16 %v936, %v935
      %v955 = vpack.c.b16 %v938, %v937
      %v956 = vpack.c.b16 %v940, %v939
      %973 = vmatpush.bf16.msra.mxu0 %v948
      %974 = vmatpush.bf16.msra.mxu0 %v947
      %975 = vmatpush.bf16.msra.mxu0 %v946
      %976 = vmatpush.bf16.msra.mxu0 %v945
      %977 = vmatpush.bf16.msra.mxu0 %v944
      %978 = vmatpush.bf16.msra.mxu0 %v943
      %979 = vmatpush.bf16.msra.mxu0 %v942
      %980 = vmatpush.bf16.msra.mxu0 %v941
      %981 = vmatmul.bf16.gmra.mxu0 %v839
      %v982 = vpop.f32.mrf.mxu0
      %v983 = vadd.f32 %v875, %v982
      %v984 = vpop.f32.mrf.mxu0
      %985 = vdwg.mxu0
      %986 = vmatpush.bf16.msra.mxu0 %v956
      %987 = vmatpush.bf16.msra.mxu0 %v955
      %988 = vmatpush.bf16.msra.mxu0 %v954
      %989 = vmatpush.bf16.msra.mxu0 %v953
      %990 = vmatpush.bf16.msra.mxu0 %v952
      %991 = vmatpush.bf16.msra.mxu0 %v951
      %992 = vmatpush.bf16.msra.mxu0 %v950
      %993 = vmatpush.bf16.msra.mxu0 %v949
      %994 = vmatmul.bf16.gmra.mxu0 %v840
      %v995 = vpop.f32.mrf.mxu0
      %v996 = vadd.f32 %v983, %v995
      %v997 = vpop.f32.mrf.mxu0
      %998 = vdwg.mxu0
      %v999 = vmax.f32 %v996, 0.0
      %v1000 = vpack.c.bf16 %v999, %v999
      %vm1001 = vcmask 257024
      %1002 = vst.msk [vmem:[%s249] sm:$0xf] %vm1001, %v1000
      %p1003 = scmp.lt.s32.totalorder %s17, 1
      %s1004 = scalar_select %p1003, %s17, 1
      %s1005 = smul.addr %s1004, 4
      %s1006 = scalar_lea.vmem %s6, %s1005
      // Predicated region
      $region45: #{encoder_forward.2} parent=43 // pred_check
        %p1007 = pneg %p166
      $region46: #{encoder_forward.2} parent=43 // pred_check_branch
        %1009 = sbr.rel (%p1007) target = $region48
      $region47: #{encoder_forward.2} parent=43 // pred_region
        _
      $region48: #{encoder_forward.2} parent=43 // pred_fallthru
        _
    $region44: #{encoder_forward.2} parent=5 // pred_fallthru
      _
    %p1010 = scmp.le.s32.totalorder 2, %s12
    // Predicated region
    $region49: #{encoder_forward.2} parent=5 // pred_check
      %p1011 = pneg %p1010
    $region50: #{encoder_forward.2} parent=5 // pred_check_branch
      %1013 = sbr.rel (%p1011) target = $region52
    $region51: #{encoder_forward.2} parent=5 // pred_region
      %s1014 = ssub.s32 %s12, 2
      // Predicated region
      $region53: #{encoder_forward.2} parent=51 // pred_check
        %p1015 = pneg %p172
      $region54: #{encoder_forward.2} parent=51 // pred_check_branch
        %1017 = sbr.rel (%p1015) target = $region56
      $region55: #{encoder_forward.2} parent=51 // pred_region
        %p1018 = scmp.lt.s32.totalorder %s18, 1
        %s1019 = scalar_select %p1018, %s18, 1
        %s1020 = smul.addr %s1019, 4
        %s1021 = scalar_lea.vmem %s6, %s1020
      $region56: #{encoder_forward.2} parent=51 // pred_fallthru
        _
    $region52: #{encoder_forward.2} parent=5 // pred_fallthru
      _
  $region6: #{encoder_forward.2} parent=0 // loop_footer
    %s16 = sadd.s32 1, %s12
  $region7: #{encoder_forward.2} parent=0 // loop_footer_branch
    %11 = sbr.rel target = $region3
  $region8: #{encoder_forward.2} parent=0 // loop_exit
    _

</llo_original>
